<compile_context>
chip_gen: v7x
topology: tpu7x:2x2x1
jax: 0.10.0
libtpu: 0.0.40
codegen_flags: <defaults>
</compile_context>

<pallas_src>
import jax
import jax.numpy as jnp
from jax.experimental import pallas as pl
from jax.experimental.pallas import tpu as pltpu


def encoder_kernel(h_ref, inv_ref,
                   wf_ref, bf_ref,
                   w2_ref, b2_ref,
                   w3_ref, b3_ref,
                   out_ref,
                   acc_ref):
    s = pl.program_id(1)

    # Init the masked-sum accumulator at the start of each sequence sweep.
    @pl.when(s == 0)
    def _():
        acc_ref[...] = jnp.zeros_like(acc_ref)

    # Hidden states arrive already multiplied by the attention mask (wrapper),
    # so the seq reduction is a plain sum; bf16 read, f32 accumulation.
    acc_ref[...] += jnp.sum(h_ref[...].astype(jnp.float32), axis=1)   # (tB, E)

    # Finalize on the last sequence tile: masked mean + fused MLP chain.
    @pl.when(s == pl.num_programs(1) - 1)
    def _():
        gpt_emb = acc_ref[...] * inv_ref[...]          # (tB, E) * (tB, 1), exact f32

        # (mlp ∘ feature_extractor[0]) fused -> ReLU -> Lin -> ReLU -> Lin
        # bf16 operands into the MXU, f32 accumulation, f32 bias adds.
        z = jnp.dot(gpt_emb.astype(jnp.bfloat16), wf_ref[...],
                    preferred_element_type=jnp.float32) + bf_ref[...]
        z = jnp.maximum(z, 0.0)
        z = jnp.dot(z.astype(jnp.bfloat16), w2_ref[...],
                    preferred_element_type=jnp.float32) + b2_ref[...]
        z = jnp.maximum(z, 0.0)
        z = jnp.dot(z.astype(jnp.bfloat16), w3_ref[...],
                    preferred_element_type=jnp.float32) + b3_ref[...]
        out_ref[...] = z.astype(out_ref.dtype)


def gpt2_ou_encoder_forward(input_ids, params, padding_idx=0,
                            tile_b=None, tile_s=None):
    # TODO(synk): GPT-2 transformer stack modeled by an embedding lookup.
    mask = (input_ids != padding_idx).astype(jnp.float32)              # (B, S)
    # Pre-mask in the wrapper (fused by XLA into the gather) so the kernel
    # never sees a lane-sparse (B, S, 1) mask stream.
    hidden = (params["wte"][input_ids] * mask[:, :, None]).astype(jnp.bfloat16)
    counts = jnp.sum(mask, axis=1, keepdims=True)                      # (B, 1)
    # Guard all-padding rows (module semantics would be a 0/0 -> NaN).
    inv_cnt = (1.0 / jnp.maximum(counts, 1.0)).astype(jnp.float32)     # (B, 1)

    B, S, E = hidden.shape
    H = params["w2"].shape[0]
    L = params["w3"].shape[1]
    L_pad = ((L + 127) // 128) * 128      # lane-dense output & final GEMM width

    # Algebraic fusion of the two back-to-back Linears (no nonlinearity):
    #   (x @ w_mlp + b_mlp) @ w1 + b1 == x @ (w_mlp @ w1) + (b_mlp @ w1 + b1)
    w_fused = (params["w_mlp"] @ params["w1"]).astype(jnp.bfloat16)
    b_fused = (params["b_mlp"] @ params["w1"] + params["b1"]).astype(jnp.float32)
    w2 = params["w2"].astype(jnp.bfloat16)
    b2 = params["b2"].astype(jnp.float32)
    w3 = jnp.pad(params["w3"], ((0, 0), (0, L_pad - L))).astype(jnp.bfloat16)
    b3 = jnp.pad(params["b3"], ((0, 0), (0, L_pad - L))).astype(jnp.float32)

    # Tiles: whole sequence per block when it fits; batch split into >= 2
    # "parallel" blocks so both v7x TensorCores get work.
    if tile_b is None:
        tile_b = B // 2 if (B >= 2 and B % 2 == 0) else B
    if tile_s is None:
        tile_s = min(S, 512)
    tB, tS = min(tile_b, B), min(tile_s, S)
    assert B % tB == 0 and S % tS == 0, "demo shapes chosen to tile evenly"

    grid = (B // tB, S // tS)

    out = pl.pallas_call(
        encoder_kernel,
        out_shape=jax.ShapeDtypeStruct((B, L_pad), jnp.float32),
        grid_spec=pltpu.PrefetchScalarGridSpec(
            num_scalar_prefetch=0,
            grid=grid,
            in_specs=[
                pl.BlockSpec((tB, tS, E), lambda b, s: (b, s, 0)),   # hidden bf16
                pl.BlockSpec((tB, 1),     lambda b, s: (b, 0)),      # 1/token count
                pl.BlockSpec((E, H),      lambda b, s: (0, 0)),      # w_fused bf16
                pl.BlockSpec((1, H),      lambda b, s: (0, 0)),      # b_fused f32
                pl.BlockSpec((H, H),      lambda b, s: (0, 0)),      # w2 bf16
                pl.BlockSpec((1, H),      lambda b, s: (0, 0)),      # b2 f32
                pl.BlockSpec((H, L_pad),  lambda b, s: (0, 0)),      # w3 bf16 (padded)
                pl.BlockSpec((1, L_pad),  lambda b, s: (0, 0)),      # b3 f32 (padded)
            ],
            out_specs=pl.BlockSpec((tB, L_pad), lambda b, s: (b, 0)),
            scratch_shapes=[
                pltpu.VMEM((tB, E), jnp.float32),   # masked-sum accumulator
            ],
        ),
        compiler_params=pltpu.CompilerParams(
            dimension_semantics=("parallel", "arbitrary"),
            vmem_limit_bytes=48 * 1024 * 1024,
        ),
    )(hidden, inv_cnt, w_fused, b_fused, w2, b2, w3, b3)

    return out[:, :L]


def init_params(key, vocab, emb_dim, hidden_dim, latent_dim):
    """Deterministic synthetic parameters (biases zero, per weights_init)."""
    ks = jax.random.split(key, 5)

    def lin_w(k, fan_in, fan_out):
        bound = 1.0 / jnp.sqrt(fan_in)
        return jax.random.uniform(k, (fan_in, fan_out), jnp.float32, -bound, bound)

    return {
        "wte":   jax.random.normal(ks[0], (vocab, emb_dim), jnp.float32) * 0.02,
        "w_mlp": lin_w(ks[1], emb_dim, hidden_dim),
        "b_mlp": jnp.zeros((1, hidden_dim), jnp.float32),
        "w1":    lin_w(ks[2], hidden_dim, hidden_dim),
        "b1":    jnp.zeros((1, hidden_dim), jnp.float32),
        "w2":    lin_w(ks[3], hidden_dim, hidden_dim),
        "b2":    jnp.zeros((1, hidden_dim), jnp.float32),
        "w3":    lin_w(ks[4], hidden_dim, latent_dim),
        "b3":    jnp.zeros((1, latent_dim), jnp.float32),
    }


def reference_forward(input_ids, params, padding_idx=0):
    """Pure-f32 module semantics on the same synthetic GPT-2 hidden states."""
    hidden = params["wte"][input_ids]                                  # (B,S,E)
    mask = (input_ids != padding_idx).astype(jnp.float32)
    masked = hidden * mask[:, :, None]
    gpt_emb = jnp.sum(masked, axis=1) / jnp.sum(mask, axis=1, keepdims=True)
    z = gpt_emb @ params["w_mlp"] + params["b_mlp"]
    z = jnp.maximum(z @ params["w1"] + params["b1"], 0.0)
    z = jnp.maximum(z @ params["w2"] + params["b2"], 0.0)
    z = z @ params["w3"] + params["b3"]
    return z


if __name__ == "__main__":
    B, S = 16, 128        # batch, sequence length
    VOCAB = 50            # synthetic vocabulary
    EMB = 128             # synthetic GPT-2 wte embedding dim (real gpt2: 768)
    HIDDEN = 128          # hidden_dim
    LATENT = 16           # latent_dim
    PAD = 0               # padding_idx

    key = jax.random.PRNGKey(0)
    k_ids, k_params = jax.random.split(key)

    params = init_params(k_params, VOCAB, EMB, HIDDEN, LATENT)

    # Non-pad tokens everywhere, then pad the tail of every row.
    input_ids = jax.random.randint(k_ids, (B, S), 1, VOCAB, dtype=jnp.int32)
    input_ids = input_ids.at[:, S - 16:].set(PAD)

    fwd = jax.jit(lambda ids: gpt2_ou_encoder_forward(ids, params, padding_idx=PAD))
    out = jax.block_until_ready(fwd(input_ids))

    ref = reference_forward(input_ids, params, padding_idx=PAD)
    assert out.shape == (B, LATENT)
    # Tolerance covers bf16 hidden states / bf16 weights and the w_mlp @ w1
    # re-association relative to the all-f32 reference.
    assert bool(jnp.allclose(out, ref, rtol=5e-2, atol=1e-3)), "mismatch vs reference"

    print("KERNEL_OK")
</pallas_src>

<mosaic_0001>
module attributes {stable_mosaic.version = 11 : i64} {
  func.func @encoder_kernel(%arg0: i32, %arg1: i32, %arg2: memref<8x128x128xbf16, #tpu.memory_space<vmem>>, %arg3: memref<8x1xf32, #tpu.memory_space<vmem>>, %arg4: memref<128x128xbf16, #tpu.memory_space<vmem>>, %arg5: memref<1x128xf32, #tpu.memory_space<vmem>>, %arg6: memref<128x128xbf16, #tpu.memory_space<vmem>>, %arg7: memref<1x128xf32, #tpu.memory_space<vmem>>, %arg8: memref<128x128xbf16, #tpu.memory_space<vmem>>, %arg9: memref<1x128xf32, #tpu.memory_space<vmem>>, %arg10: memref<8x128xf32, #tpu.memory_space<vmem>>, %arg11: memref<8x128xf32, #tpu.memory_space<vmem>>) attributes {dimension_semantics = [#tpu.dimension_semantics<parallel>, #tpu.dimension_semantics<arbitrary>], iteration_bounds = array<i64: 2, 1>, scalar_prefetch = 0 : i64, scratch_operands = 1 : i64, tpu.core_type = #tpu.core_type<tc>, window_params = [{transform_indices = @transform_0, window_bounds = array<i64: 8, 128, 128>}, {transform_indices = @transform_1, window_bounds = array<i64: 8, 1>}, {pipeline_mode = #tpu.pipeline_mode<synchronous>, transform_indices = @transform_2, window_bounds = array<i64: 128, 128>}, {pipeline_mode = #tpu.pipeline_mode<synchronous>, transform_indices = @transform_3, window_bounds = array<i64: 1, 128>}, {pipeline_mode = #tpu.pipeline_mode<synchronous>, transform_indices = @transform_4, window_bounds = array<i64: 128, 128>}, {pipeline_mode = #tpu.pipeline_mode<synchronous>, transform_indices = @transform_5, window_bounds = array<i64: 1, 128>}, {pipeline_mode = #tpu.pipeline_mode<synchronous>, transform_indices = @transform_6, window_bounds = array<i64: 128, 128>}, {pipeline_mode = #tpu.pipeline_mode<synchronous>, transform_indices = @transform_7, window_bounds = array<i64: 1, 128>}, {transform_indices = @transform_8, window_bounds = array<i64: 8, 128>}]} {
    %c0_i32 = arith.constant 0 : i32
    %0 = arith.cmpi eq, %arg1, %c0_i32 : i32
    %1 = arith.extui %0 : i1 to i32
    %c0_i32_0 = arith.constant 0 : i32
    %2 = arith.cmpi ne, %1, %c0_i32_0 : i32
    scf.if %2 {
      %cst_9 = arith.constant 0.000000e+00 : f32
      %12 = vector.broadcast %cst_9 : f32 to vector<8x128xf32>
      %c0_10 = arith.constant 0 : index
      %c0_11 = arith.constant 0 : index
      %13 = vector.load %arg11[%c0_10, %c0_11] : memref<8x128xf32, #tpu.memory_space<vmem>>, vector<8x128xf32>
      tpu.vector_store %arg11[%c0_10, %c0_11], %12 {strides = array<i32>} : memref<8x128xf32, #tpu.memory_space<vmem>>, vector<8x128xf32>,
    } else {
    }
    %c0 = arith.constant 0 : index
    %c0_1 = arith.constant 0 : index
    %3 = vector.load %arg11[%c0, %c0_1] : memref<8x128xf32, #tpu.memory_space<vmem>>, vector<8x128xf32>
    %c0_2 = arith.constant 0 : index
    %c0_3 = arith.constant 0 : index
    %c0_4 = arith.constant 0 : index
    %4 = vector.load %arg2[%c0_2, %c0_3, %c0_4] : memref<8x128x128xbf16, #tpu.memory_space<vmem>>, vector<8x128x128xbf16>
    %5 = arith.extf %4 : vector<8x128x128xbf16> to vector<8x128x128xf32>
    %cst = arith.constant dense<0.000000e+00> : vector<8x128xf32>
    %6 = vector.multi_reduction <add>, %5, %cst [1] : vector<8x128x128xf32> to vector<8x128xf32>
    %7 = arith.addf %3, %6 : vector<8x128xf32>
    %c0_5 = arith.constant 0 : index
    %c0_6 = arith.constant 0 : index
    %8 = vector.load %arg11[%c0_5, %c0_6] : memref<8x128xf32, #tpu.memory_space<vmem>>, vector<8x128xf32>
    tpu.vector_store %arg11[%c0_5, %c0_6], %7 {strides = array<i32>} : memref<8x128xf32, #tpu.memory_space<vmem>>, vector<8x128xf32>,
    %c0_i32_7 = arith.constant 0 : i32
    %9 = arith.cmpi eq, %arg1, %c0_i32_7 : i32
    %10 = arith.extui %9 : i1 to i32
    %c0_i32_8 = arith.constant 0 : i32
    %11 = arith.cmpi ne, %10, %c0_i32_8 : i32
    scf.if %11 {
      %c0_9 = arith.constant 0 : index
      %c0_10 = arith.constant 0 : index
      %12 = vector.load %arg11[%c0_9, %c0_10] : memref<8x128xf32, #tpu.memory_space<vmem>>, vector<8x128xf32>
      %c0_11 = arith.constant 0 : index
      %c0_12 = arith.constant 0 : index
      %13 = vector.load %arg3[%c0_11, %c0_12] : memref<8x1xf32, #tpu.memory_space<vmem>>, vector<8x1xf32>
      %14 = vector.broadcast %13 : vector<8x1xf32> to vector<8x128xf32>
      %15 = arith.mulf %12, %14 : vector<8x128xf32>
      %16 = arith.truncf %15 : vector<8x128xf32> to vector<8x128xbf16>
      %c0_13 = arith.constant 0 : index
      %c0_14 = arith.constant 0 : index
      %17 = vector.load %arg4[%c0_13, %c0_14] : memref<128x128xbf16, #tpu.memory_space<vmem>>, vector<128x128xbf16>
      %cst_15 = arith.constant dense<0.000000e+00> : vector<8x128xf32>
      %18 = tpu.matmul %16, %17, %cst_15 {dimension_numbers = #tpu.dot_dimension_numbers<[1], [0], [0], [1], [0, 0, 1, 1], [], []>} : vector<8x128xbf16>, vector<128x128xbf16>, vector<8x128xf32> -> vector<8x128xf32>
      %c0_16 = arith.constant 0 : index
      %c0_17 = arith.constant 0 : index
      %19 = vector.load %arg5[%c0_16, %c0_17] : memref<1x128xf32, #tpu.memory_space<vmem>>, vector<1x128xf32>
      %20 = vector.broadcast %19 : vector<1x128xf32> to vector<8x128xf32>
      %21 = arith.addf %18, %20 : vector<8x128xf32>
      %cst_18 = arith.constant 0.000000e+00 : f32
      %22 = vector.broadcast %cst_18 : f32 to vector<8x128xf32>
      %23 = arith.maximumf %21, %22 : vector<8x128xf32>
      %24 = arith.truncf %23 : vector<8x128xf32> to vector<8x128xbf16>
      %c0_19 = arith.constant 0 : index
      %c0_20 = arith.constant 0 : index
      %25 = vector.load %arg6[%c0_19, %c0_20] : memref<128x128xbf16, #tpu.memory_space<vmem>>, vector<128x128xbf16>
      %cst_21 = arith.constant dense<0.000000e+00> : vector<8x128xf32>
      %26 = tpu.matmul %24, %25, %cst_21 {dimension_numbers = #tpu.dot_dimension_numbers<[1], [0], [0], [1], [0, 0, 1, 1], [], []>} : vector<8x128xbf16>, vector<128x128xbf16>, vector<8x128xf32> -> vector<8x128xf32>
      %c0_22 = arith.constant 0 : index
      %c0_23 = arith.constant 0 : index
      %27 = vector.load %arg7[%c0_22, %c0_23] : memref<1x128xf32, #tpu.memory_space<vmem>>, vector<1x128xf32>
      %28 = vector.broadcast %27 : vector<1x128xf32> to vector<8x128xf32>
      %29 = arith.addf %26, %28 : vector<8x128xf32>
      %cst_24 = arith.constant 0.000000e+00 : f32
      %30 = vector.broadcast %cst_24 : f32 to vector<8x128xf32>
      %31 = arith.maximumf %29, %30 : vector<8x128xf32>
      %32 = arith.truncf %31 : vector<8x128xf32> to vector<8x128xbf16>
      %c0_25 = arith.constant 0 : index
      %c0_26 = arith.constant 0 : index
      %33 = vector.load %arg8[%c0_25, %c0_26] : memref<128x128xbf16, #tpu.memory_space<vmem>>, vector<128x128xbf16>
      %cst_27 = arith.constant dense<0.000000e+00> : vector<8x128xf32>
      %34 = tpu.matmul %32, %33, %cst_27 {dimension_numbers = #tpu.dot_dimension_numbers<[1], [0], [0], [1], [0, 0, 1, 1], [], []>} : vector<8x128xbf16>, vector<128x128xbf16>, vector<8x128xf32> -> vector<8x128xf32>
      %c0_28 = arith.constant 0 : index
      %c0_29 = arith.constant 0 : index
      %35 = vector.load %arg9[%c0_28, %c0_29] : memref<1x128xf32, #tpu.memory_space<vmem>>, vector<1x128xf32>
      %36 = vector.broadcast %35 : vector<1x128xf32> to vector<8x128xf32>
      %37 = arith.addf %34, %36 : vector<8x128xf32>
      %c0_30 = arith.constant 0 : index
      %c0_31 = arith.constant 0 : index
      %38 = vector.load %arg10[%c0_30, %c0_31] : memref<8x128xf32, #tpu.memory_space<vmem>>, vector<8x128xf32>
      tpu.vector_store %arg10[%c0_30, %c0_31], %37 {strides = array<i32>} : memref<8x128xf32, #tpu.memory_space<vmem>>, vector<8x128xf32>,
    } else {
    }
    return
  }
  func.func @transform_0(%arg0: i32, %arg1: i32) -> (i32, i32, i32) {
    %c0_i32 = arith.constant 0 : i32
    %c0_i32_0 = arith.constant 0 : i32
    return %arg0, %arg1, %c0_i32 : i32, i32, i32
  }
  func.func @transform_1(%arg0: i32, %arg1: i32) -> (i32, i32) {
    %c0_i32 = arith.constant 0 : i32
    %c0_i32_0 = arith.constant 0 : i32
    return %arg0, %c0_i32 : i32, i32
  }
  func.func @transform_2(%arg0: i32, %arg1: i32) -> (i32, i32) {
    %c0_i32 = arith.constant 0 : i32
    %c0_i32_0 = arith.constant 0 : i32
    %c0_i32_1 = arith.constant 0 : i32
    return %c0_i32, %c0_i32_0 : i32, i32
  }
  func.func @transform_3(%arg0: i32, %arg1: i32) -> (i32, i32) {
    %c0_i32 = arith.constant 0 : i32
    %c0_i32_0 = arith.constant 0 : i32
    %c0_i32_1 = arith.constant 0 : i32
    return %c0_i32, %c0_i32_0 : i32, i32
  }
  func.func @transform_4(%arg0: i32, %arg1: i32) -> (i32, i32) {
    %c0_i32 = arith.constant 0 : i32
    %c0_i32_0 = arith.constant 0 : i32
    %c0_i32_1 = arith.constant 0 : i32
    return %c0_i32, %c0_i32_0 : i32, i32
  }
  func.func @transform_5(%arg0: i32, %arg1: i32) -> (i32, i32) {
    %c0_i32 = arith.constant 0 : i32
    %c0_i32_0 = arith.constant 0 : i32
    %c0_i32_1 = arith.constant 0 : i32
    return %c0_i32, %c0_i32_0 : i32, i32
  }
  func.func @transform_6(%arg0: i32, %arg1: i32) -> (i32, i32) {
    %c0_i32 = arith.constant 0 : i32
    %c0_i32_0 = arith.constant 0 : i32
    %c0_i32_1 = arith.constant 0 : i32
    return %c0_i32, %c0_i32_0 : i32, i32
  }
  func.func @transform_7(%arg0: i32, %arg1: i32) -> (i32, i32) {
    %c0_i32 = arith.constant 0 : i32
    %c0_i32_0 = arith.constant 0 : i32
    %c0_i32_1 = arith.constant 0 : i32
    return %c0_i32, %c0_i32_0 : i32, i32
  }
  func.func @transform_8(%arg0: i32, %arg1: i32) -> (i32, i32) {
    %c0_i32 = arith.constant 0 : i32
    %c0_i32_0 = arith.constant 0 : i32
    return %arg0, %c0_i32 : i32, i32
  }
}

</mosaic_0001>

<llo_original>
// kernel: _lambda_.1
$region0: #{_lambda_.1}
  #allocation0 [shape = 'u32[]', space=smem, size = 0x4, offset = 0x4, fixed_abs, tag = 'smem constant byte address 0x4 - core index']
  #allocation1 [shape = 'u32[144,128]{1,0:T(1,128)}', space=vmem, size = 0x12000, scoped, tag = 'internal scratch']
  #allocation2 [shape = 'f32[8,128]{1,0:T(8,128)}', space=vmem, size = 0x1000, scoped, tag = 'scratch operand']
  %s0 = inlined_call_operand.vmem [shape: bf16[16,128,128], index: 0, kind: input, shape index: {}]
  %s1 = inlined_call_operand.vmem [shape: f32[16,1], index: 1, kind: input, shape index: {}]
  %s2 = inlined_call_operand.vmem [shape: bf16[128,128], index: 2, kind: input, shape index: {}]
  %s3 = inlined_call_operand.vmem [shape: f32[1,128], index: 3, kind: input, shape index: {}, may-alias: {3,5}]
  %s4 = inlined_call_operand.vmem [shape: bf16[128,128], index: 4, kind: input, shape index: {}]
  %s5 = inlined_call_operand.vmem [shape: f32[1,128], index: 5, kind: input, shape index: {}, may-alias: {3,5}]
  %s6 = inlined_call_operand.vmem [shape: bf16[128,128], index: 6, kind: input, shape index: {}]
  %s7 = inlined_call_operand.vmem [shape: f32[1,128], index: 7, kind: input, shape index: {}]
  %s8 = inlined_call_operand.hbm [shape: f32[16,128], index: 8, kind: output, shape index: {}]
  %s9 = sld [smem:[#allocation0]]
  $region73: #{_lambda_.1} parent=0
    _
  %s11 = ssub.s32 1, %s9
  %s12 = scalar_select 0, %s11, %s9
  $region1: #{_lambda_.1} parent=0
    #allocation3 [shape = 'u8[8192]{0}', space=vmem, size = 0x2000, scoped, tag = 'output window, operand 0']
    #allocation4 [shape = 's32[2]{0}', space=sflag, size = 0x8, scoped, tag = 'scoped memory for _lambda_.1']
    %13 = vsyncpa [#allocation4], 0
    %s14 = scalar_lea.sflag [#allocation4], 1
    %15 = vsyncpa %s14, 0
    loop: start=0, step=1, limit=4
    $region2: #{_lambda_.1} parent=1 // loop_pre_header
      _
    $region3: #{_lambda_.1} parent=1 // loop_header
      %s17 = sphi 0, %s21
      %p18 = scmp.ge.s32.totalorder %s17, 4
      %s24 = sphi 0, %s36
      %s25 = sphi 0, %s32
      %s26 = sphi 0, %s24
      %s27 = sphi 0, %s25
      %s28 = sphi 0, %s26
      %s29 = sphi 0, %s27
      %s41 = sphi 0, %s43
      %s44 = sphi 0, %s41
      %s45 = sphi 0, %s44
      %s61 = sphi 0, %s45
      %s67 = sphi 0, %s69
      %s70 = sphi 0, %s67
      %s71 = sphi 0, %s70
      %s87 = sphi 0, %s71
      %s91 = sphi 0, %s91
      %s93 = sphi 0, %s91
      %s94 = sphi 0, %s93
      %s108 = sphi 0, %s94
      %s112 = sphi 0, %s112
      %s114 = sphi 0, %s112
      %s115 = sphi 0, %s114
      %s129 = sphi 0, %s115
      %s133 = sphi 0, %s133
      %s135 = sphi 0, %s133
      %s136 = sphi 0, %s135
      %s150 = sphi 0, %s136
      %s154 = sphi 0, %s154
      %s156 = sphi 0, %s154
      %s157 = sphi 0, %s156
      %s171 = sphi 0, %s157
      %s175 = sphi 0, %s175
      %s177 = sphi 0, %s175
      %s178 = sphi 0, %s177
      %s192 = sphi 0, %s178
      %s196 = sphi 0, %s196
      %s198 = sphi 0, %s196
      %s199 = sphi 0, %s198
      %s213 = sphi 0, %s199
      %s219 = sphi 0, %s221
      %s222 = sphi 0, %s219
      %s223 = sphi 0, %s222
      %s239 = sphi 0, %s223
    $region4: #{_lambda_.1} parent=1 // loop_header_branch
      %20 = sbr.rel (%p18) target = $region8
    $region5: #{_lambda_.1} parent=1 // loop_body
      %s22 = ssub.s32 %s17, 1
      %s23 = ssub.s32 %s17, 2
      %s30 = sadd.s32 1, %s25
      %p31 = scmp.ge.s32.totalorder %s30, 1
      %s32 = scalar_select %p31, 0, %s30
      %s33 = sadd.s32 1, %s24
      %s34 = scalar_select %p31, %s33, %s24
      %p35 = scmp.ge.s32.totalorder %s34, 2
      %s36 = scalar_select %p35, 0, %s34
      %s37 = ssub.s32 %s24, %s36
      %s38 = ssub.s32 %s25, %s32
      %s39 = sor.u32 %s37, %s38
      %p40 = scmp.eq.s32.totalorder %s39, 0
      %s42 = sadd.s32 %s41, 1
      %s43 = scalar_select %p40, %s41, %s42
      %p46 = pneg %p40
      %p47 = scmp.eq.s32.totalorder %s17, 1
      %p48 = por %p46, %p47
      %p49 = scmp.ne.s32.totalorder %s41, %s44
      %p50 = scmp.eq.s32.totalorder %s17, 0
      %p51 = por %p49, %p50
      %p52 = scmp.ne.s32.totalorder %s41, %s44
      %p53 = scmp.eq.s32.totalorder %s22, 1
      %p54 = por %p52, %p53
      %p55 = scmp.ne.s32.totalorder %s44, %s45
      %p56 = scmp.eq.s32.totalorder %s22, 0
      %p57 = por %p55, %p56
      %p58 = scmp.ne.s32.totalorder %s44, %s45
      %p59 = scmp.eq.s32.totalorder %s23, 1
      %p60 = por %p58, %p59
      %p62 = scmp.ne.s32.totalorder %s45, %s61
      %p63 = scmp.eq.s32.totalorder %s23, 0
      %p64 = por %p62, %p63
      %s65 = ssub.s32 %s24, %s36
      %p66 = scmp.eq.s32.totalorder %s65, 0
      %s68 = sadd.s32 %s67, 1
      %s69 = scalar_select %p66, %s67, %s68
      %p72 = pneg %p66
      %p73 = scmp.eq.s32.totalorder %s17, 1
      %p74 = por %p72, %p73
      %p75 = scmp.ne.s32.totalorder %s67, %s70
      %p76 = scmp.eq.s32.totalorder %s17, 0
      %p77 = por %p75, %p76
      %p78 = scmp.ne.s32.totalorder %s67, %s70
      %p79 = scmp.eq.s32.totalorder %s22, 1
      %p80 = por %p78, %p79
      %p81 = scmp.ne.s32.totalorder %s70, %s71
      %p82 = scmp.eq.s32.totalorder %s22, 0
      %p83 = por %p81, %p82
      %p84 = scmp.ne.s32.totalorder %s70, %s71
      %p85 = scmp.eq.s32.totalorder %s23, 1
      %p86 = por %p84, %p85
      %p88 = scmp.ne.s32.totalorder %s71, %s87
      %p89 = scmp.eq.s32.totalorder %s23, 0
      %p90 = por %p88, %p89
      %s92 = sadd.s32 %s91, 1
      %p95 = scmp.eq.s32.totalorder %s17, 1
      %p96 = scmp.ne.s32.totalorder %s91, %s93
      %p97 = scmp.eq.s32.totalorder %s17, 0
      %p98 = por %p96, %p97
      %p99 = scmp.ne.s32.totalorder %s91, %s93
      %p100 = scmp.eq.s32.totalorder %s22, 1
      %p101 = por %p99, %p100
      %p102 = scmp.ne.s32.totalorder %s93, %s94
      %p103 = scmp.eq.s32.totalorder %s22, 0
      %p104 = por %p102, %p103
      %p105 = scmp.ne.s32.totalorder %s93, %s94
      %p106 = scmp.eq.s32.totalorder %s23, 1
      %p107 = por %p105, %p106
      %p109 = scmp.ne.s32.totalorder %s94, %s108
      %p110 = scmp.eq.s32.totalorder %s23, 0
      %p111 = por %p109, %p110
      %s113 = sadd.s32 %s112, 1
      %p116 = scmp.eq.s32.totalorder %s17, 1
      %p117 = scmp.ne.s32.totalorder %s112, %s114
      %p118 = scmp.eq.s32.totalorder %s17, 0
      %p119 = por %p117, %p118
      %p120 = scmp.ne.s32.totalorder %s112, %s114
      %p121 = scmp.eq.s32.totalorder %s22, 1
      %p122 = por %p120, %p121
      %p123 = scmp.ne.s32.totalorder %s114, %s115
      %p124 = scmp.eq.s32.totalorder %s22, 0
      %p125 = por %p123, %p124
      %p126 = scmp.ne.s32.totalorder %s114, %s115
      %p127 = scmp.eq.s32.totalorder %s23, 1
      %p128 = por %p126, %p127
      %p130 = scmp.ne.s32.totalorder %s115, %s129
      %p131 = scmp.eq.s32.totalorder %s23, 0
      %p132 = por %p130, %p131
      %s134 = sadd.s32 %s133, 1
      %p137 = scmp.eq.s32.totalorder %s17, 1
      %p138 = scmp.ne.s32.totalorder %s133, %s135
      %p139 = scmp.eq.s32.totalorder %s17, 0
      %p140 = por %p138, %p139
      %p141 = scmp.ne.s32.totalorder %s133, %s135
      %p142 = scmp.eq.s32.totalorder %s22, 1
      %p143 = por %p141, %p142
      %p144 = scmp.ne.s32.totalorder %s135, %s136
      %p145 = scmp.eq.s32.totalorder %s22, 0
      %p146 = por %p144, %p145
      %p147 = scmp.ne.s32.totalorder %s135, %s136
      %p148 = scmp.eq.s32.totalorder %s23, 1
      %p149 = por %p147, %p148
      %p151 = scmp.ne.s32.totalorder %s136, %s150
      %p152 = scmp.eq.s32.totalorder %s23, 0
      %p153 = por %p151, %p152
      %s155 = sadd.s32 %s154, 1
      %p158 = scmp.eq.s32.totalorder %s17, 1
      %p159 = scmp.ne.s32.totalorder %s154, %s156
      %p160 = scmp.eq.s32.totalorder %s17, 0
      %p161 = por %p159, %p160
      %p162 = scmp.ne.s32.totalorder %s154, %s156
      %p163 = scmp.eq.s32.totalorder %s22, 1
      %p164 = por %p162, %p163
      %p165 = scmp.ne.s32.totalorder %s156, %s157
      %p166 = scmp.eq.s32.totalorder %s22, 0
      %p167 = por %p165, %p166
      %p168 = scmp.ne.s32.totalorder %s156, %s157
      %p169 = scmp.eq.s32.totalorder %s23, 1
      %p170 = por %p168, %p169
      %p172 = scmp.ne.s32.totalorder %s157, %s171
      %p173 = scmp.eq.s32.totalorder %s23, 0
      %p174 = por %p172, %p173
      %s176 = sadd.s32 %s175, 1
      %p179 = scmp.eq.s32.totalorder %s17, 1
      %p180 = scmp.ne.s32.totalorder %s175, %s177
      %p181 = scmp.eq.s32.totalorder %s17, 0
      %p182 = por %p180, %p181
      %p183 = scmp.ne.s32.totalorder %s175, %s177
      %p184 = scmp.eq.s32.totalorder %s22, 1
      %p185 = por %p183, %p184
      %p186 = scmp.ne.s32.totalorder %s177, %s178
      %p187 = scmp.eq.s32.totalorder %s22, 0
      %p188 = por %p186, %p187
      %p189 = scmp.ne.s32.totalorder %s177, %s178
      %p190 = scmp.eq.s32.totalorder %s23, 1
      %p191 = por %p189, %p190
      %p193 = scmp.ne.s32.totalorder %s178, %s192
      %p194 = scmp.eq.s32.totalorder %s23, 0
      %p195 = por %p193, %p194
      %s197 = sadd.s32 %s196, 1
      %p200 = scmp.eq.s32.totalorder %s17, 1
      %p201 = scmp.ne.s32.totalorder %s196, %s198
      %p202 = scmp.eq.s32.totalorder %s17, 0
      %p203 = por %p201, %p202
      %p204 = scmp.ne.s32.totalorder %s196, %s198
      %p205 = scmp.eq.s32.totalorder %s22, 1
      %p206 = por %p204, %p205
      %p207 = scmp.ne.s32.totalorder %s198, %s199
      %p208 = scmp.eq.s32.totalorder %s22, 0
      %p209 = por %p207, %p208
      %p210 = scmp.ne.s32.totalorder %s198, %s199
      %p211 = scmp.eq.s32.totalorder %s23, 1
      %p212 = por %p210, %p211
      %p214 = scmp.ne.s32.totalorder %s199, %s213
      %p215 = scmp.eq.s32.totalorder %s23, 0
      %p216 = por %p214, %p215
      %s217 = ssub.s32 %s24, %s36
      %p218 = scmp.eq.s32.totalorder %s217, 0
      %s220 = sadd.s32 %s219, 1
      %s221 = scalar_select %p218, %s219, %s220
      %p224 = pneg %p218
      %p225 = scmp.eq.s32.totalorder %s17, 1
      %p226 = por %p224, %p225
      %p227 = scmp.ne.s32.totalorder %s219, %s222
      %p228 = scmp.eq.s32.totalorder %s17, 0
      %p229 = por %p227, %p228
      %p230 = scmp.ne.s32.totalorder %s219, %s222
      %p231 = scmp.eq.s32.totalorder %s22, 1
      %p232 = por %p230, %p231
      %p233 = scmp.ne.s32.totalorder %s222, %s223
      %p234 = scmp.eq.s32.totalorder %s22, 0
      %p235 = por %p233, %p234
      %p236 = scmp.ne.s32.totalorder %s222, %s223
      %p237 = scmp.eq.s32.totalorder %s23, 1
      %p238 = por %p236, %p237
      %p240 = scmp.ne.s32.totalorder %s223, %s239
      %p241 = scmp.eq.s32.totalorder %s23, 0
      %p242 = por %p240, %p241
      %p243 = scmp.le.s32.totalorder 1, %s17
      %p244 = scmp.lt.s32.totalorder %s17, 3
      %p245 = pnand %p243, %p244
      %p246 = pneg %p245
      // Predicated region
      $region9: #{_lambda_.1} parent=5 // pred_check
        _
      $region10: #{_lambda_.1} parent=5 // pred_check_branch
        %248 = sbr.rel (%p245) target = $region12
      $region11: #{_lambda_.1} parent=5 // pred_region
        %s249 = ssub.s32 %s17, 1
        // Predicated region
        $region13: #{_lambda_.1} parent=11 // pred_check
          %p250 = pneg %p104
        $region14: #{_lambda_.1} parent=11 // pred_check_branch
          %252 = sbr.rel (%p250) target = $region16
        $region15: #{_lambda_.1} parent=11 // pred_region
          _
        $region16: #{_lambda_.1} parent=11 // pred_fallthru
          _
        // Predicated region
        $region17: #{_lambda_.1} parent=11 // pred_check
          %p253 = pneg %p125
        $region18: #{_lambda_.1} parent=11 // pred_check_branch
          %255 = sbr.rel (%p253) target = $region20
        $region19: #{_lambda_.1} parent=11 // pred_region
          _
        $region20: #{_lambda_.1} parent=11 // pred_fallthru
          _
        // Predicated region
        $region21: #{_lambda_.1} parent=11 // pred_check
          %p256 = pneg %p146
        $region22: #{_lambda_.1} parent=11 // pred_check_branch
          %258 = sbr.rel (%p256) target = $region24
        $region23: #{_lambda_.1} parent=11 // pred_region
          _
        $region24: #{_lambda_.1} parent=11 // pred_fallthru
          _
        // Predicated region
        $region25: #{_lambda_.1} parent=11 // pred_check
          %p259 = pneg %p167
        $region26: #{_lambda_.1} parent=11 // pred_check_branch
          %261 = sbr.rel (%p259) target = $region28
        $region27: #{_lambda_.1} parent=11 // pred_region
          _
        $region28: #{_lambda_.1} parent=11 // pred_fallthru
          _
        // Predicated region
        $region29: #{_lambda_.1} parent=11 // pred_check
          %p262 = pneg %p188
        $region30: #{_lambda_.1} parent=11 // pred_check_branch
          %264 = sbr.rel (%p262) target = $region32
        $region31: #{_lambda_.1} parent=11 // pred_region
          _
        $region32: #{_lambda_.1} parent=11 // pred_fallthru
          _
        // Predicated region
        $region33: #{_lambda_.1} parent=11 // pred_check
          %p265 = pneg %p209
        $region34: #{_lambda_.1} parent=11 // pred_check_branch
          %267 = sbr.rel (%p265) target = $region36
        $region35: #{_lambda_.1} parent=11 // pred_region
          _
        $region36: #{_lambda_.1} parent=11 // pred_fallthru
          _
      $region12: #{_lambda_.1} parent=5 // pred_fallthru
        _
      %p268 = scmp.lt.s32.totalorder %s17, 2
      // Predicated region
      $region37: #{_lambda_.1} parent=5 // pred_check
        %p269 = pneg %p268
      $region38: #{_lambda_.1} parent=5 // pred_check_branch
        %271 = sbr.rel (%p269) target = $region40
      $region39: #{_lambda_.1} parent=5 // pred_region
        // Predicated region
        $region41: #{_lambda_.1} parent=39 // pred_check
          %p272 = pneg %p51
        $region42: #{_lambda_.1} parent=39 // pred_check_branch
          %274 = sbr.rel (%p272) target = $region44
        $region43: #{_lambda_.1} parent=39 // pred_region
          %s275 = smul.u32 8, %s24
          %s276 = smul.u32 16, %s25
          %p277 = scmp.lt.s32.totalorder %s275, 15
          %s278 = scalar_select %p277, %s275, 15
          %p279 = scmp.lt.s32.totalorder %s276, 15
          %s280 = scalar_select %p279, %s276, 15
          %s281 = smul.addr %s278, 16
          %s282 = sadd.s32 %s280, %s281
          %s283 = smul.addr %s282, 4
          %s284 = scalar_lea.vmem %s0, %s283
          %s285 = smul.u32 8, %s24
          %s286 = smul.u32 16, %s25
        $region44: #{_lambda_.1} parent=39 // pred_fallthru
          _
        // Predicated region
        $region45: #{_lambda_.1} parent=39 // pred_check
          %p287 = pneg %p77
        $region46: #{_lambda_.1} parent=39 // pred_check_branch
          %289 = sbr.rel (%p287) target = $region48
        $region47: #{_lambda_.1} parent=39 // pred_region
          %p290 = scmp.lt.s32.totalorder %s24, 1
          %s291 = scalar_select %p290, %s24, 1
          %s292 = smul.addr %s291, 8
          %s293 = scalar_lea.vmem %s1, %s292
        $region48: #{_lambda_.1} parent=39 // pred_fallthru
          _
      $region40: #{_lambda_.1} parent=5 // pred_fallthru
        _
      %p294 = scmp.le.s32.totalorder 1, %s17
      %p295 = scmp.lt.s32.totalorder %s17, 3
      %p296 = pnand %p294, %p295
      %p297 = pneg %p296
      // Predicated region
      $region49: #{_lambda_.1} parent=5 // pred_check
        _
      $region50: #{_lambda_.1} parent=5 // pred_check_branch
        %299 = sbr.rel (%p296) target = $region52
      $region51: #{_lambda_.1} parent=5 // pred_region
        %s300 = ssub.s32 %s17, 1
        %s301 = smul.u32 8, %s26
        %s302 = smul.u32 16, %s27
        %p303 = scmp.lt.s32.totalorder %s301, 15
        %s304 = scalar_select %p303, %s301, 15
        %p305 = scmp.lt.s32.totalorder %s302, 15
        %s306 = scalar_select %p305, %s302, 15
        %s307 = smul.addr %s304, 16
        %s308 = sadd.s32 %s306, %s307
        %s309 = smul.addr %s308, 4
        %s310 = scalar_lea.vmem %s0, %s309
        %p311 = pneg %p57
        %p312 = pneg %p54
        %p313 = scmp.lt.s32.totalorder %s26, 1
        %s314 = scalar_select %p313, %s26, 1
        %s315 = smul.addr %s314, 8
        %s316 = scalar_lea.vmem %s1, %s315
        %p317 = pneg %p83
        %p318 = pneg %p80
        %p319 = pneg %p104
        %p320 = pneg %p101
        %p321 = pneg %p125
        %p322 = pneg %p122
        %p323 = pneg %p146
        %p324 = pneg %p143
        %p325 = pneg %p167
        %p326 = pneg %p164
        %p327 = pneg %p188
        %p328 = pneg %p185
        %p329 = pneg %p209
        %p330 = pneg %p206
        %p331 = pneg %p235
        %p332 = pneg %p232
        %s333 = sand.u32 %s222, 1
        %s334 = scalar_lea.sflag [#allocation4], %s333
        %s335 = sand.u32 %s222, 1
        %s336 = smul.addr %s335, 8
        %s337 = scalar_lea.vmem [#allocation3], %s336
        %s338 = smul.u32 8, %s26
        %s339 = smul.u32 16, %s27
        %p340 = scmp.lt.s32.totalorder %s338, 15
        %s341 = scalar_select %p340, %s338, 15
        %p342 = scmp.lt.s32.totalorder %s339, 15
        %s343 = scalar_select %p342, %s339, 15
        %s344 = smul.addr %s341, 16
        %s345 = sadd.s32 %s343, %s344
        %s346 = smul.addr %s345, 4
        %s347 = scalar_lea.vmem %s0, %s346
        %s348 = smul.u32 8, %s26
        %s349 = smul.u32 16, %s27
        %p350 = scmp.lt.s32.totalorder %s26, 1
        %s351 = scalar_select %p350, %s26, 1
        %s352 = smul.addr %s351, 8
        %s353 = scalar_lea.vmem %s1, %s352
        %p355 = scmp.eq.s32.totalorder %s27, 0
        // Predicated region
        $region53: #{_lambda_.1} parent=51 // pred_check
          %p356 = pneg %p355
        $region54: #{_lambda_.1} parent=51 // pred_check_branch
          %358 = sbr.rel (%p356) target = $region56
        $region55: #{_lambda_.1} parent=51 // pred_region
          %359 = vst [vmem:[#allocation2] sm:$0xff] 0.0
        $region56: #{_lambda_.1} parent=51 // pred_fallthru
          _
        %v360 = vld [vmem:[#allocation2] sm:$0xff]
        %v361 = vld [vmem:[%s347] sm:$0xf]
        %v362 = vld [vmem:[%s347 + $0x4] sm:$0xf]
        %v363 = vld [vmem:[%s347 + $0x8] sm:$0xf]
        %v364 = vld [vmem:[%s347 + $0xc] sm:$0xf]
        %v365 = vld [vmem:[%s347 + $0x10] sm:$0xf]
        %v366 = vld [vmem:[%s347 + $0x14] sm:$0xf]
        %v367 = vld [vmem:[%s347 + $0x18] sm:$0xf]
        %v368 = vld [vmem:[%s347 + $0x1c] sm:$0xf]
        %v369 = vld [vmem:[%s347 + $0x20] sm:$0xf]
        %v370 = vld [vmem:[%s347 + $0x24] sm:$0xf]
        %v371 = vld [vmem:[%s347 + $0x28] sm:$0xf]
        %v372 = vld [vmem:[%s347 + $0x2c] sm:$0xf]
        %v373 = vld [vmem:[%s347 + $0x30] sm:$0xf]
        %v374 = vld [vmem:[%s347 + $0x34] sm:$0xf]
        %v375 = vld [vmem:[%s347 + $0x38] sm:$0xf]
        %v376 = vld [vmem:[%s347 + $0x3c] sm:$0xf]
        %v377 = vld [vmem:[%s347 + $0x40] sm:$0xf]
        %v378 = vld [vmem:[%s347 + $0x44] sm:$0xf]
        %v379 = vld [vmem:[%s347 + $0x48] sm:$0xf]
        %v380 = vld [vmem:[%s347 + $0x4c] sm:$0xf]
        %v381 = vld [vmem:[%s347 + $0x50] sm:$0xf]
        %v382 = vld [vmem:[%s347 + $0x54] sm:$0xf]
        %v383 = vld [vmem:[%s347 + $0x58] sm:$0xf]
        %v384 = vld [vmem:[%s347 + $0x5c] sm:$0xf]
        %v385 = vld [vmem:[%s347 + $0x60] sm:$0xf]
        %v386 = vld [vmem:[%s347 + $0x64] sm:$0xf]
        %v387 = vld [vmem:[%s347 + $0x68] sm:$0xf]
        %v388 = vld [vmem:[%s347 + $0x6c] sm:$0xf]
        %v389 = vld [vmem:[%s347 + $0x70] sm:$0xf]
        %v390 = vld [vmem:[%s347 + $0x74] sm:$0xf]
        %v391 = vld [vmem:[%s347 + $0x78] sm:$0xf]
        %v392 = vld [vmem:[%s347 + $0x7c] sm:$0xf]
        %v393 = vld [vmem:[%s347 + $0x80] sm:$0xf]
        %v394 = vld [vmem:[%s347 + $0x84] sm:$0xf]
        %v395 = vld [vmem:[%s347 + $0x88] sm:$0xf]
        %v396 = vld [vmem:[%s347 + $0x8c] sm:$0xf]
        %v397 = vld [vmem:[%s347 + $0x90] sm:$0xf]
        %v398 = vld [vmem:[%s347 + $0x94] sm:$0xf]
        %v399 = vld [vmem:[%s347 + $0x98] sm:$0xf]
        %v400 = vld [vmem:[%s347 + $0x9c] sm:$0xf]
        %v401 = vld [vmem:[%s347 + $0xa0] sm:$0xf]
        %v402 = vld [vmem:[%s347 + $0xa4] sm:$0xf]
        %v403 = vld [vmem:[%s347 + $0xa8] sm:$0xf]
        %v404 = vld [vmem:[%s347 + $0xac] sm:$0xf]
        %v405 = vld [vmem:[%s347 + $0xb0] sm:$0xf]
        %v406 = vld [vmem:[%s347 + $0xb4] sm:$0xf]
        %v407 = vld [vmem:[%s347 + $0xb8] sm:$0xf]
        %v408 = vld [vmem:[%s347 + $0xbc] sm:$0xf]
        %v409 = vld [vmem:[%s347 + $0xc0] sm:$0xf]
        %v410 = vld [vmem:[%s347 + $0xc4] sm:$0xf]
        %v411 = vld [vmem:[%s347 + $0xc8] sm:$0xf]
        %v412 = vld [vmem:[%s347 + $0xcc] sm:$0xf]
        %v413 = vld [vmem:[%s347 + $0xd0] sm:$0xf]
        %v414 = vld [vmem:[%s347 + $0xd4] sm:$0xf]
        %v415 = vld [vmem:[%s347 + $0xd8] sm:$0xf]
        %v416 = vld [vmem:[%s347 + $0xdc] sm:$0xf]
        %v417 = vld [vmem:[%s347 + $0xe0] sm:$0xf]
        %v418 = vld [vmem:[%s347 + $0xe4] sm:$0xf]
        %v419 = vld [vmem:[%s347 + $0xe8] sm:$0xf]
        %v420 = vld [vmem:[%s347 + $0xec] sm:$0xf]
        %v421 = vld [vmem:[%s347 + $0xf0] sm:$0xf]
        %v422 = vld [vmem:[%s347 + $0xf4] sm:$0xf]
        %v423 = vld [vmem:[%s347 + $0xf8] sm:$0xf]
        %v424 = vld [vmem:[%s347 + $0xfc] sm:$0xf]
        %v425 = vld [vmem:[%s347 + $0x100] sm:$0xf]
        %v426 = vld [vmem:[%s347 + $0x104] sm:$0xf]
        %v427 = vld [vmem:[%s347 + $0x108] sm:$0xf]
        %v428 = vld [vmem:[%s347 + $0x10c] sm:$0xf]
        %v429 = vld [vmem:[%s347 + $0x110] sm:$0xf]
        %v430 = vld [vmem:[%s347 + $0x114] sm:$0xf]
        %v431 = vld [vmem:[%s347 + $0x118] sm:$0xf]
        %v432 = vld [vmem:[%s347 + $0x11c] sm:$0xf]
        %v433 = vld [vmem:[%s347 + $0x120] sm:$0xf]
        %v434 = vld [vmem:[%s347 + $0x124] sm:$0xf]
        %v435 = vld [vmem:[%s347 + $0x128] sm:$0xf]
        %v436 = vld [vmem:[%s347 + $0x12c] sm:$0xf]
        %v437 = vld [vmem:[%s347 + $0x130] sm:$0xf]
        %v438 = vld [vmem:[%s347 + $0x134] sm:$0xf]
        %v439 = vld [vmem:[%s347 + $0x138] sm:$0xf]
        %v440 = vld [vmem:[%s347 + $0x13c] sm:$0xf]
        %v441 = vld [vmem:[%s347 + $0x140] sm:$0xf]
        %v442 = vld [vmem:[%s347 + $0x144] sm:$0xf]
        %v443 = vld [vmem:[%s347 + $0x148] sm:$0xf]
        %v444 = vld [vmem:[%s347 + $0x14c] sm:$0xf]
        %v445 = vld [vmem:[%s347 + $0x150] sm:$0xf]
        %v446 = vld [vmem:[%s347 + $0x154] sm:$0xf]
        %v447 = vld [vmem:[%s347 + $0x158] sm:$0xf]
        %v448 = vld [vmem:[%s347 + $0x15c] sm:$0xf]
        %v449 = vld [vmem:[%s347 + $0x160] sm:$0xf]
        %v450 = vld [vmem:[%s347 + $0x164] sm:$0xf]
        %v451 = vld [vmem:[%s347 + $0x168] sm:$0xf]
        %v452 = vld [vmem:[%s347 + $0x16c] sm:$0xf]
        %v453 = vld [vmem:[%s347 + $0x170] sm:$0xf]
        %v454 = vld [vmem:[%s347 + $0x174] sm:$0xf]
        %v455 = vld [vmem:[%s347 + $0x178] sm:$0xf]
        %v456 = vld [vmem:[%s347 + $0x17c] sm:$0xf]
        %v457 = vld [vmem:[%s347 + $0x180] sm:$0xf]
        %v458 = vld [vmem:[%s347 + $0x184] sm:$0xf]
        %v459 = vld [vmem:[%s347 + $0x188] sm:$0xf]
        %v460 = vld [vmem:[%s347 + $0x18c] sm:$0xf]
        %v461 = vld [vmem:[%s347 + $0x190] sm:$0xf]
        %v462 = vld [vmem:[%s347 + $0x194] sm:$0xf]
        %v463 = vld [vmem:[%s347 + $0x198] sm:$0xf]
        %v464 = vld [vmem:[%s347 + $0x19c] sm:$0xf]
        %v465 = vld [vmem:[%s347 + $0x1a0] sm:$0xf]
        %v466 = vld [vmem:[%s347 + $0x1a4] sm:$0xf]
        %v467 = vld [vmem:[%s347 + $0x1a8] sm:$0xf]
        %v468 = vld [vmem:[%s347 + $0x1ac] sm:$0xf]
        %v469 = vld [vmem:[%s347 + $0x1b0] sm:$0xf]
        %v470 = vld [vmem:[%s347 + $0x1b4] sm:$0xf]
        %v471 = vld [vmem:[%s347 + $0x1b8] sm:$0xf]
        %v472 = vld [vmem:[%s347 + $0x1bc] sm:$0xf]
        %v473 = vld [vmem:[%s347 + $0x1c0] sm:$0xf]
        %v474 = vld [vmem:[%s347 + $0x1c4] sm:$0xf]
        %v475 = vld [vmem:[%s347 + $0x1c8] sm:$0xf]
        %v476 = vld [vmem:[%s347 + $0x1cc] sm:$0xf]
        %v477 = vld [vmem:[%s347 + $0x1d0] sm:$0xf]
        %v478 = vld [vmem:[%s347 + $0x1d4] sm:$0xf]
        %v479 = vld [vmem:[%s347 + $0x1d8] sm:$0xf]
        %v480 = vld [vmem:[%s347 + $0x1dc] sm:$0xf]
        %v481 = vld [vmem:[%s347 + $0x1e0] sm:$0xf]
        %v482 = vld [vmem:[%s347 + $0x1e4] sm:$0xf]
        %v483 = vld [vmem:[%s347 + $0x1e8] sm:$0xf]
        %v484 = vld [vmem:[%s347 + $0x1ec] sm:$0xf]
        %v485 = vld [vmem:[%s347 + $0x1f0] sm:$0xf]
        %v486 = vld [vmem:[%s347 + $0x1f4] sm:$0xf]
        %v487 = vld [vmem:[%s347 + $0x1f8] sm:$0xf]
        %v488 = vld [vmem:[%s347 + $0x1fc] sm:$0xf]
        %v489 = vunpack.c.l.bf16 %v361
        %v490 = vunpack.c.l.bf16 %v362
        %v491 = vunpack.c.l.bf16 %v363
        %v492 = vunpack.c.l.bf16 %v364
        %v493 = vunpack.c.l.bf16 %v365
        %v494 = vunpack.c.l.bf16 %v366
        %v495 = vunpack.c.l.bf16 %v367
        %v496 = vunpack.c.l.bf16 %v368
        %v497 = vunpack.c.l.bf16 %v369
        %v498 = vunpack.c.l.bf16 %v370
        %v499 = vunpack.c.l.bf16 %v371
        %v500 = vunpack.c.l.bf16 %v372
        %v501 = vunpack.c.l.bf16 %v373
        %v502 = vunpack.c.l.bf16 %v374
        %v503 = vunpack.c.l.bf16 %v375
        %v504 = vunpack.c.l.bf16 %v376
        %v505 = vunpack.c.l.bf16 %v377
        %v506 = vunpack.c.l.bf16 %v378
        %v507 = vunpack.c.l.bf16 %v379
        %v508 = vunpack.c.l.bf16 %v380
        %v509 = vunpack.c.l.bf16 %v381
        %v510 = vunpack.c.l.bf16 %v382
        %v511 = vunpack.c.l.bf16 %v383
        %v512 = vunpack.c.l.bf16 %v384
        %v513 = vunpack.c.l.bf16 %v385
        %v514 = vunpack.c.l.bf16 %v386
        %v515 = vunpack.c.l.bf16 %v387
        %v516 = vunpack.c.l.bf16 %v388
        %v517 = vunpack.c.l.bf16 %v389
        %v518 = vunpack.c.l.bf16 %v390
        %v519 = vunpack.c.l.bf16 %v391
        %v520 = vunpack.c.l.bf16 %v392
        %v521 = vunpack.c.l.bf16 %v393
        %v522 = vunpack.c.l.bf16 %v394
        %v523 = vunpack.c.l.bf16 %v395
        %v524 = vunpack.c.l.bf16 %v396
        %v525 = vunpack.c.l.bf16 %v397
        %v526 = vunpack.c.l.bf16 %v398
        %v527 = vunpack.c.l.bf16 %v399
        %v528 = vunpack.c.l.bf16 %v400
        %v529 = vunpack.c.l.bf16 %v401
        %v530 = vunpack.c.l.bf16 %v402
        %v531 = vunpack.c.l.bf16 %v403
        %v532 = vunpack.c.l.bf16 %v404
        %v533 = vunpack.c.l.bf16 %v405
        %v534 = vunpack.c.l.bf16 %v406
        %v535 = vunpack.c.l.bf16 %v407
        %v536 = vunpack.c.l.bf16 %v408
        %v537 = vunpack.c.l.bf16 %v409
        %v538 = vunpack.c.l.bf16 %v410
        %v539 = vunpack.c.l.bf16 %v411
        %v540 = vunpack.c.l.bf16 %v412
        %v541 = vunpack.c.l.bf16 %v413
        %v542 = vunpack.c.l.bf16 %v414
        %v543 = vunpack.c.l.bf16 %v415
        %v544 = vunpack.c.l.bf16 %v416
        %v545 = vunpack.c.l.bf16 %v417
        %v546 = vunpack.c.l.bf16 %v418
        %v547 = vunpack.c.l.bf16 %v419
        %v548 = vunpack.c.l.bf16 %v420
        %v549 = vunpack.c.l.bf16 %v421
        %v550 = vunpack.c.l.bf16 %v422
        %v551 = vunpack.c.l.bf16 %v423
        %v552 = vunpack.c.l.bf16 %v424
        %v553 = vunpack.c.l.bf16 %v425
        %v554 = vunpack.c.l.bf16 %v426
        %v555 = vunpack.c.l.bf16 %v427
        %v556 = vunpack.c.l.bf16 %v428
        %v557 = vunpack.c.l.bf16 %v429
        %v558 = vunpack.c.l.bf16 %v430
        %v559 = vunpack.c.l.bf16 %v431
        %v560 = vunpack.c.l.bf16 %v432
        %v561 = vunpack.c.l.bf16 %v433
        %v562 = vunpack.c.l.bf16 %v434
        %v563 = vunpack.c.l.bf16 %v435
        %v564 = vunpack.c.l.bf16 %v436
        %v565 = vunpack.c.l.bf16 %v437
        %v566 = vunpack.c.l.bf16 %v438
        %v567 = vunpack.c.l.bf16 %v439
        %v568 = vunpack.c.l.bf16 %v440
        %v569 = vunpack.c.l.bf16 %v441
        %v570 = vunpack.c.l.bf16 %v442
        %v571 = vunpack.c.l.bf16 %v443
        %v572 = vunpack.c.l.bf16 %v444
        %v573 = vunpack.c.l.bf16 %v445
        %v574 = vunpack.c.l.bf16 %v446
        %v575 = vunpack.c.l.bf16 %v447
        %v576 = vunpack.c.l.bf16 %v448
        %v577 = vunpack.c.l.bf16 %v449
        %v578 = vunpack.c.l.bf16 %v450
        %v579 = vunpack.c.l.bf16 %v451
        %v580 = vunpack.c.l.bf16 %v452
        %v581 = vunpack.c.l.bf16 %v453
        %v582 = vunpack.c.l.bf16 %v454
        %v583 = vunpack.c.l.bf16 %v455
        %v584 = vunpack.c.l.bf16 %v456
        %v585 = vunpack.c.l.bf16 %v457
        %v586 = vunpack.c.l.bf16 %v458
        %v587 = vunpack.c.l.bf16 %v459
        %v588 = vunpack.c.l.bf16 %v460
        %v589 = vunpack.c.l.bf16 %v461
        %v590 = vunpack.c.l.bf16 %v462
        %v591 = vunpack.c.l.bf16 %v463
        %v592 = vunpack.c.l.bf16 %v464
        %v593 = vunpack.c.l.bf16 %v465
        %v594 = vunpack.c.l.bf16 %v466
        %v595 = vunpack.c.l.bf16 %v467
        %v596 = vunpack.c.l.bf16 %v468
        %v597 = vunpack.c.l.bf16 %v469
        %v598 = vunpack.c.l.bf16 %v470
        %v599 = vunpack.c.l.bf16 %v471
        %v600 = vunpack.c.l.bf16 %v472
        %v601 = vunpack.c.l.bf16 %v473
        %v602 = vunpack.c.l.bf16 %v474
        %v603 = vunpack.c.l.bf16 %v475
        %v604 = vunpack.c.l.bf16 %v476
        %v605 = vunpack.c.l.bf16 %v477
        %v606 = vunpack.c.l.bf16 %v478
        %v607 = vunpack.c.l.bf16 %v479
        %v608 = vunpack.c.l.bf16 %v480
        %v609 = vunpack.c.l.bf16 %v481
        %v610 = vunpack.c.l.bf16 %v482
        %v611 = vunpack.c.l.bf16 %v483
        %v612 = vunpack.c.l.bf16 %v484
        %v613 = vunpack.c.l.bf16 %v485
        %v614 = vunpack.c.l.bf16 %v486
        %v615 = vunpack.c.l.bf16 %v487
        %v616 = vunpack.c.l.bf16 %v488
        %v617 = vadd.f32 %v489, %v490
        %v618 = vadd.f32 %v617, %v491
        %v619 = vadd.f32 %v618, %v492
        %v620 = vadd.f32 %v619, %v493
        %v621 = vadd.f32 %v620, %v494
        %v622 = vadd.f32 %v621, %v495
        %v623 = vadd.f32 %v622, %v496
        %v624 = vadd.f32 %v623, %v497
        %v625 = vadd.f32 %v624, %v498
        %v626 = vadd.f32 %v625, %v499
        %v627 = vadd.f32 %v626, %v500
        %v628 = vadd.f32 %v627, %v501
        %v629 = vadd.f32 %v628, %v502
        %v630 = vadd.f32 %v629, %v503
        %v631 = vadd.f32 %v630, %v504
        %v632 = vrot.slane %v631, 4
        %v633 = vadd.f32 %v631, %v632
        %v634 = vrot.slane %v633, 2
        %v635 = vadd.f32 %v633, %v634
        %v636 = vrot.slane %v635, 1
        %v637 = vadd.f32 %v635, %v636
        %v638 = vadd.f32 %v505, %v506
        %v639 = vadd.f32 %v638, %v507
        %v640 = vadd.f32 %v639, %v508
        %v641 = vadd.f32 %v640, %v509
        %v642 = vadd.f32 %v641, %v510
        %v643 = vadd.f32 %v642, %v511
        %v644 = vadd.f32 %v643, %v512
        %v645 = vadd.f32 %v644, %v513
        %v646 = vadd.f32 %v645, %v514
        %v647 = vadd.f32 %v646, %v515
        %v648 = vadd.f32 %v647, %v516
        %v649 = vadd.f32 %v648, %v517
        %v650 = vadd.f32 %v649, %v518
        %v651 = vadd.f32 %v650, %v519
        %v652 = vadd.f32 %v651, %v520
        %v653 = vrot.slane %v652, 4
        %v654 = vadd.f32 %v652, %v653
        %v655 = vrot.slane %v654, 2
        %v656 = vadd.f32 %v654, %v655
        %v657 = vrot.slane %v656, 1
        %v658 = vadd.f32 %v656, %v657
        %v659 = vadd.f32 %v521, %v522
        %v660 = vadd.f32 %v659, %v523
        %v661 = vadd.f32 %v660, %v524
        %v662 = vadd.f32 %v661, %v525
        %v663 = vadd.f32 %v662, %v526
        %v664 = vadd.f32 %v663, %v527
        %v665 = vadd.f32 %v664, %v528
        %v666 = vadd.f32 %v665, %v529
        %v667 = vadd.f32 %v666, %v530
        %v668 = vadd.f32 %v667, %v531
        %v669 = vadd.f32 %v668, %v532
        %v670 = vadd.f32 %v669, %v533
        %v671 = vadd.f32 %v670, %v534
        %v672 = vadd.f32 %v671, %v535
        %v673 = vadd.f32 %v672, %v536
        %v674 = vrot.slane %v673, 4
        %v675 = vadd.f32 %v673, %v674
        %v676 = vrot.slane %v675, 2
        %v677 = vadd.f32 %v675, %v676
        %v678 = vrot.slane %v677, 1
        %v679 = vadd.f32 %v677, %v678
        %v680 = vadd.f32 %v537, %v538
        %v681 = vadd.f32 %v680, %v539
        %v682 = vadd.f32 %v681, %v540
        %v683 = vadd.f32 %v682, %v541
        %v684 = vadd.f32 %v683, %v542
        %v685 = vadd.f32 %v684, %v543
        %v686 = vadd.f32 %v685, %v544
        %v687 = vadd.f32 %v686, %v545
        %v688 = vadd.f32 %v687, %v546
        %v689 = vadd.f32 %v688, %v547
        %v690 = vadd.f32 %v689, %v548
        %v691 = vadd.f32 %v690, %v549
        %v692 = vadd.f32 %v691, %v550
        %v693 = vadd.f32 %v692, %v551
        %v694 = vadd.f32 %v693, %v552
        %v695 = vrot.slane %v694, 4
        %v696 = vadd.f32 %v694, %v695
        %v697 = vrot.slane %v696, 2
        %v698 = vadd.f32 %v696, %v697
        %v699 = vrot.slane %v698, 1
        %v700 = vadd.f32 %v698, %v699
        %v701 = vadd.f32 %v553, %v554
        %v702 = vadd.f32 %v701, %v555
        %v703 = vadd.f32 %v702, %v556
        %v704 = vadd.f32 %v703, %v557
        %v705 = vadd.f32 %v704, %v558
        %v706 = vadd.f32 %v705, %v559
        %v707 = vadd.f32 %v706, %v560
        %v708 = vadd.f32 %v707, %v561
        %v709 = vadd.f32 %v708, %v562
        %v710 = vadd.f32 %v709, %v563
        %v711 = vadd.f32 %v710, %v564
        %v712 = vadd.f32 %v711, %v565
        %v713 = vadd.f32 %v712, %v566
        %v714 = vadd.f32 %v713, %v567
        %v715 = vadd.f32 %v714, %v568
        %v716 = vrot.slane %v715, 4
        %v717 = vadd.f32 %v715, %v716
        %v718 = vrot.slane %v717, 2
        %v719 = vadd.f32 %v717, %v718
        %v720 = vrot.slane %v719, 1
        %v721 = vadd.f32 %v719, %v720
        %v722 = vadd.f32 %v569, %v570
        %v723 = vadd.f32 %v722, %v571
        %v724 = vadd.f32 %v723, %v572
        %v725 = vadd.f32 %v724, %v573
        %v726 = vadd.f32 %v725, %v574
        %v727 = vadd.f32 %v726, %v575
        %v728 = vadd.f32 %v727, %v576
        %v729 = vadd.f32 %v728, %v577
        %v730 = vadd.f32 %v729, %v578
        %v731 = vadd.f32 %v730, %v579
        %v732 = vadd.f32 %v731, %v580
        %v733 = vadd.f32 %v732, %v581
        %v734 = vadd.f32 %v733, %v582
        %v735 = vadd.f32 %v734, %v583
        %v736 = vadd.f32 %v735, %v584
        %v737 = vrot.slane %v736, 4
        %v738 = vadd.f32 %v736, %v737
        %v739 = vrot.slane %v738, 2
        %v740 = vadd.f32 %v738, %v739
        %v741 = vrot.slane %v740, 1
        %v742 = vadd.f32 %v740, %v741
        %v743 = vadd.f32 %v585, %v586
        %v744 = vadd.f32 %v743, %v587
        %v745 = vadd.f32 %v744, %v588
        %v746 = vadd.f32 %v745, %v589
        %v747 = vadd.f32 %v746, %v590
        %v748 = vadd.f32 %v747, %v591
        %v749 = vadd.f32 %v748, %v592
        %v750 = vadd.f32 %v749, %v593
        %v751 = vadd.f32 %v750, %v594
        %v752 = vadd.f32 %v751, %v595
        %v753 = vadd.f32 %v752, %v596
        %v754 = vadd.f32 %v753, %v597
        %v755 = vadd.f32 %v754, %v598
        %v756 = vadd.f32 %v755, %v599
        %v757 = vadd.f32 %v756, %v600
        %v758 = vrot.slane %v757, 4
        %v759 = vadd.f32 %v757, %v758
        %v760 = vrot.slane %v759, 2
        %v761 = vadd.f32 %v759, %v760
        %v762 = vrot.slane %v761, 1
        %v763 = vadd.f32 %v761, %v762
        %v764 = vadd.f32 %v601, %v602
        %v765 = vadd.f32 %v764, %v603
        %v766 = vadd.f32 %v765, %v604
        %v767 = vadd.f32 %v766, %v605
        %v768 = vadd.f32 %v767, %v606
        %v769 = vadd.f32 %v768, %v607
        %v770 = vadd.f32 %v769, %v608
        %v771 = vadd.f32 %v770, %v609
        %v772 = vadd.f32 %v771, %v610
        %v773 = vadd.f32 %v772, %v611
        %v774 = vadd.f32 %v773, %v612
        %v775 = vadd.f32 %v774, %v613
        %v776 = vadd.f32 %v775, %v614
        %v777 = vadd.f32 %v776, %v615
        %v778 = vadd.f32 %v777, %v616
        %v779 = vrot.slane %v778, 4
        %v780 = vadd.f32 %v778, %v779
        %v781 = vrot.slane %v780, 2
        %v782 = vadd.f32 %v780, %v781
        %v783 = vrot.slane %v782, 1
        %v784 = vadd.f32 %v782, %v783
        %vm793 = vcmask 1041409
        %v794 = vsel %vm793, %v658, %v637
        %vm795 = vcmask 1042434
        %v796 = vsel %vm795, %v679, %v794
        %vm797 = vcmask 1043459
        %v798 = vsel %vm797, %v700, %v796
        %vm799 = vcmask 1044484
        %v800 = vsel %vm799, %v721, %v798
        %vm801 = vcmask 1045509
        %v802 = vsel %vm801, %v742, %v800
        %vm803 = vcmask 1046534
        %v804 = vsel %vm803, %v763, %v802
        %vm805 = vcmask 1047559
        %v806 = vsel %vm805, %v784, %v804
        %v808 = vadd.f32 %v360, %v806
        %809 = vst [vmem:[#allocation2] sm:$0xff] %v808
        // Predicated region
        $region57: #{_lambda_.1} parent=51 // pred_check
          %p810 = pneg %p355
        $region58: #{_lambda_.1} parent=51 // pred_check_branch
          %812 = sbr.rel (%p810) target = $region60
        $region59: #{_lambda_.1} parent=51 // pred_region
          %v813 = vld [vmem:[#allocation2] sm:$0xff]
          %v814 = vld [vmem:[%s353] sm:$0xff]
          %816 = vset.pattern.permute.xlu0 0
          %817 = vperm.xlu0 %816, %v814
          %v818 = vpop.permute.xlu0 %817
          %v820 = vmul.f32 %v813, %v818
          %v821 = vpack.c.bf16 %v820, %v820
          %v822 = vld [vmem:[%s2] sm:$0xf]
          %v823 = vld [vmem:[%s2 + $0x4] sm:$0xf]
          %v824 = vld [vmem:[%s2 + $0x8] sm:$0xf]
          %v825 = vld [vmem:[%s2 + $0xc] sm:$0xf]
          %v826 = vld [vmem:[%s2 + $0x10] sm:$0xf]
          %v827 = vld [vmem:[%s2 + $0x14] sm:$0xf]
          %v828 = vld [vmem:[%s2 + $0x18] sm:$0xf]
          %v829 = vld [vmem:[%s2 + $0x1c] sm:$0xf]
          %v830 = vld [vmem:[%s2 + $0x20] sm:$0xf]
          %v831 = vld [vmem:[%s2 + $0x24] sm:$0xf]
          %v832 = vld [vmem:[%s2 + $0x28] sm:$0xf]
          %v833 = vld [vmem:[%s2 + $0x2c] sm:$0xf]
          %v834 = vld [vmem:[%s2 + $0x30] sm:$0xf]
          %v835 = vld [vmem:[%s2 + $0x34] sm:$0xf]
          %v836 = vld [vmem:[%s2 + $0x38] sm:$0xf]
          %v837 = vld [vmem:[%s2 + $0x3c] sm:$0xf]
          %v838 = vld [vmem:[%s3] sm:$0x1]
          %v840 = vlaneseq
          %v841 = vshrl.u32 %v840, 7
          %v842 = vsub.s32 0, %v841
          %v843 = vrot.slane %v838, %v842
          %v861 = vunpack.c.l.b16 %v822
          %v862 = vunpack.c.l.b16 %v823
          %v863 = vunpack.c.l.b16 %v824
          %v864 = vunpack.c.l.b16 %v825
          %v865 = vunpack.c.l.b16 %v826
          %v866 = vunpack.c.l.b16 %v827
          %v867 = vunpack.c.l.b16 %v828
          %v868 = vunpack.c.l.b16 %v829
          %v869 = vunpack.c.l.b16 %v830
          %v870 = vunpack.c.l.b16 %v831
          %v871 = vunpack.c.l.b16 %v832
          %v872 = vunpack.c.l.b16 %v833
          %v873 = vunpack.c.l.b16 %v834
          %v874 = vunpack.c.l.b16 %v835
          %v875 = vunpack.c.l.b16 %v836
          %v876 = vunpack.c.l.b16 %v837
          %v877 = vpack.c.b16 %v862, %v861
          %v878 = vpack.c.b16 %v864, %v863
          %v879 = vpack.c.b16 %v866, %v865
          %v880 = vpack.c.b16 %v868, %v867
          %v881 = vpack.c.b16 %v870, %v869
          %v882 = vpack.c.b16 %v872, %v871
          %v883 = vpack.c.b16 %v874, %v873
          %v884 = vpack.c.b16 %v876, %v875
          %893 = vmatprep.subr.bf16.mxu0 0
          %894 = vmatpush1.bf16.msra.mxu0 %v877
          %895 = vmatprep.subr.bf16.mxu0 0
          %896 = vmatpush1.bf16.msra.mxu0 %v878
          %897 = vmatprep.subr.bf16.mxu0 0
          %898 = vmatpush1.bf16.msra.mxu0 %v879
          %899 = vmatprep.subr.bf16.mxu0 0
          %900 = vmatpush1.bf16.msra.mxu0 %v880
          %901 = vmatprep.subr.bf16.mxu0 0
          %902 = vmatpush1.bf16.msra.mxu0 %v881
          %903 = vmatprep.subr.bf16.mxu0 0
          %904 = vmatpush1.bf16.msra.mxu0 %v882
          %905 = vmatprep.subr.bf16.mxu0 0
          %906 = vmatpush1.bf16.msra.mxu0 %v883
          %907 = vmatprep.subr.bf16.mxu0 0
          %908 = vmatpush1.bf16.msra.mxu0 %v884
          %909 = vmatprep.subr.bf16.mxu0 0
          %910 = vmatpush1.bf16.msra.mxu0 0
          %911 = vmatprep.subr.bf16.mxu0 0
          %912 = vmatpush1.bf16.msra.mxu0 0
          %913 = vmatprep.subr.bf16.mxu0 0
          %914 = vmatpush1.bf16.msra.mxu0 0
          %915 = vmatprep.subr.bf16.mxu0 0
          %916 = vmatpush1.bf16.msra.mxu0 0
          %917 = vmatprep.subr.bf16.mxu0 0
          %918 = vmatpush1.bf16.msra.mxu0 0
          %919 = vmatprep.subr.bf16.mxu0 0
          %920 = vmatpush1.bf16.msra.mxu0 0
          %921 = vmatprep.subr.bf16.mxu0 0
          %922 = vmatpush1.bf16.msra.mxu0 0
          %923 = vmatprep.subr.bf16.mxu0 0
          %924 = vmatpush1.bf16.msra.mxu0 0
          %925 = vmatprep.mubr.bf16.mxu0 0
          %926 = vmatmul.mubr.bf16.gmra.mrb[0].mxu0 %v821
          %v927 = vpop.f32.mrb[0].mxu0
          %v928 = vadd.f32 %v843, %v927
          %v929 = vpop.f32.mrb[0].mxu0
          %v930 = vpop.f32.mrb[0].mxu0
          %v931 = vpop.f32.mrb[0].mxu0
          %932 = vdwg.mxu0
          %v933 = vmax.f32 %v928, 0.0
          %v934 = vpack.c.bf16 %v933, %v933
          %v935 = vld [vmem:[%s4] sm:$0xf]
          %v936 = vld [vmem:[%s4 + $0x4] sm:$0xf]
          %v937 = vld [vmem:[%s4 + $0x8] sm:$0xf]
          %v938 = vld [vmem:[%s4 + $0xc] sm:$0xf]
          %v939 = vld [vmem:[%s4 + $0x10] sm:$0xf]
          %v940 = vld [vmem:[%s4 + $0x14] sm:$0xf]
          %v941 = vld [vmem:[%s4 + $0x18] sm:$0xf]
          %v942 = vld [vmem:[%s4 + $0x1c] sm:$0xf]
          %v943 = vld [vmem:[%s4 + $0x20] sm:$0xf]
          %v944 = vld [vmem:[%s4 + $0x24] sm:$0xf]
          %v945 = vld [vmem:[%s4 + $0x28] sm:$0xf]
          %v946 = vld [vmem:[%s4 + $0x2c] sm:$0xf]
          %v947 = vld [vmem:[%s4 + $0x30] sm:$0xf]
          %v948 = vld [vmem:[%s4 + $0x34] sm:$0xf]
          %v949 = vld [vmem:[%s4 + $0x38] sm:$0xf]
          %v950 = vld [vmem:[%s4 + $0x3c] sm:$0xf]
          %v951 = vld [vmem:[%s5] sm:$0x1]
          %v953 = vlaneseq
          %v954 = vshrl.u32 %v953, 7
          %v955 = vsub.s32 0, %v954
          %v956 = vrot.slane %v951, %v955
          %v974 = vunpack.c.l.b16 %v935
          %v975 = vunpack.c.l.b16 %v936
          %v976 = vunpack.c.l.b16 %v937
          %v977 = vunpack.c.l.b16 %v938
          %v978 = vunpack.c.l.b16 %v939
          %v979 = vunpack.c.l.b16 %v940
          %v980 = vunpack.c.l.b16 %v941
          %v981 = vunpack.c.l.b16 %v942
          %v982 = vunpack.c.l.b16 %v943
          %v983 = vunpack.c.l.b16 %v944
          %v984 = vunpack.c.l.b16 %v945
          %v985 = vunpack.c.l.b16 %v946
          %v986 = vunpack.c.l.b16 %v947
          %v987 = vunpack.c.l.b16 %v948
          %v988 = vunpack.c.l.b16 %v949
          %v989 = vunpack.c.l.b16 %v950
          %v990 = vpack.c.b16 %v975, %v974
          %v991 = vpack.c.b16 %v977, %v976
          %v992 = vpack.c.b16 %v979, %v978
          %v993 = vpack.c.b16 %v981, %v980
          %v994 = vpack.c.b16 %v983, %v982
          %v995 = vpack.c.b16 %v985, %v984
          %v996 = vpack.c.b16 %v987, %v986
          %v997 = vpack.c.b16 %v989, %v988
          %1006 = vmatprep.subr.bf16.mxu0 0
          %1007 = vmatpush1.bf16.msra.mxu0 %v990
          %1008 = vmatprep.subr.bf16.mxu0 0
          %1009 = vmatpush1.bf16.msra.mxu0 %v991
          %1010 = vmatprep.subr.bf16.mxu0 0
          %1011 = vmatpush1.bf16.msra.mxu0 %v992
          %1012 = vmatprep.subr.bf16.mxu0 0
          %1013 = vmatpush1.bf16.msra.mxu0 %v993
          %1014 = vmatprep.subr.bf16.mxu0 0
          %1015 = vmatpush1.bf16.msra.mxu0 %v994
          %1016 = vmatprep.subr.bf16.mxu0 0
          %1017 = vmatpush1.bf16.msra.mxu0 %v995
          %1018 = vmatprep.subr.bf16.mxu0 0
          %1019 = vmatpush1.bf16.msra.mxu0 %v996
          %1020 = vmatprep.subr.bf16.mxu0 0
          %1021 = vmatpush1.bf16.msra.mxu0 %v997
          %1022 = vmatprep.subr.bf16.mxu0 0
          %1023 = vmatpush1.bf16.msra.mxu0 0
          %1024 = vmatprep.subr.bf16.mxu0 0
          %1025 = vmatpush1.bf16.msra.mxu0 0
          %1026 = vmatprep.subr.bf16.mxu0 0
          %1027 = vmatpush1.bf16.msra.mxu0 0
          %1028 = vmatprep.subr.bf16.mxu0 0
          %1029 = vmatpush1.bf16.msra.mxu0 0
          %1030 = vmatprep.subr.bf16.mxu0 0
          %1031 = vmatpush1.bf16.msra.mxu0 0
          %1032 = vmatprep.subr.bf16.mxu0 0
          %1033 = vmatpush1.bf16.msra.mxu0 0
          %1034 = vmatprep.subr.bf16.mxu0 0
          %1035 = vmatpush1.bf16.msra.mxu0 0
          %1036 = vmatprep.subr.bf16.mxu0 0
          %1037 = vmatpush1.bf16.msra.mxu0 0
          %1038 = vmatprep.mubr.bf16.mxu0 0
          %1039 = vmatmul.mubr.bf16.gmra.mrb[0].mxu0 %v934
          %v1040 = vpop.f32.mrb[0].mxu0
          %v1041 = vadd.f32 %v956, %v1040
          %v1042 = vpop.f32.mrb[0].mxu0
          %v1043 = vpop.f32.mrb[0].mxu0
          %v1044 = vpop.f32.mrb[0].mxu0
          %1045 = vdwg.mxu0
          %v1046 = vmax.f32 %v1041, 0.0
          %v1047 = vpack.c.bf16 %v1046, %v1046
          %v1048 = vld [vmem:[%s6] sm:$0xf]
          %v1049 = vld [vmem:[%s6 + $0x4] sm:$0xf]
          %v1050 = vld [vmem:[%s6 + $0x8] sm:$0xf]
          %v1051 = vld [vmem:[%s6 + $0xc] sm:$0xf]
          %v1052 = vld [vmem:[%s6 + $0x10] sm:$0xf]
          %v1053 = vld [vmem:[%s6 + $0x14] sm:$0xf]
          %v1054 = vld [vmem:[%s6 + $0x18] sm:$0xf]
          %v1055 = vld [vmem:[%s6 + $0x1c] sm:$0xf]
          %v1056 = vld [vmem:[%s6 + $0x20] sm:$0xf]
          %v1057 = vld [vmem:[%s6 + $0x24] sm:$0xf]
          %v1058 = vld [vmem:[%s6 + $0x28] sm:$0xf]
          %v1059 = vld [vmem:[%s6 + $0x2c] sm:$0xf]
          %v1060 = vld [vmem:[%s6 + $0x30] sm:$0xf]
          %v1061 = vld [vmem:[%s6 + $0x34] sm:$0xf]
          %v1062 = vld [vmem:[%s6 + $0x38] sm:$0xf]
          %v1063 = vld [vmem:[%s6 + $0x3c] sm:$0xf]
          %v1064 = vld [vmem:[%s7] sm:$0x1]
          %v1066 = vlaneseq
          %v1067 = vshrl.u32 %v1066, 7
          %v1068 = vsub.s32 0, %v1067
          %v1069 = vrot.slane %v1064, %v1068
          %v1087 = vunpack.c.l.b16 %v1048
          %v1088 = vunpack.c.l.b16 %v1049
          %v1089 = vunpack.c.l.b16 %v1050
          %v1090 = vunpack.c.l.b16 %v1051
          %v1091 = vunpack.c.l.b16 %v1052
          %v1092 = vunpack.c.l.b16 %v1053
          %v1093 = vunpack.c.l.b16 %v1054
          %v1094 = vunpack.c.l.b16 %v1055
          %v1095 = vunpack.c.l.b16 %v1056
          %v1096 = vunpack.c.l.b16 %v1057
          %v1097 = vunpack.c.l.b16 %v1058
          %v1098 = vunpack.c.l.b16 %v1059
          %v1099 = vunpack.c.l.b16 %v1060
          %v1100 = vunpack.c.l.b16 %v1061
          %v1101 = vunpack.c.l.b16 %v1062
          %v1102 = vunpack.c.l.b16 %v1063
          %v1103 = vpack.c.b16 %v1088, %v1087
          %v1104 = vpack.c.b16 %v1090, %v1089
          %v1105 = vpack.c.b16 %v1092, %v1091
          %v1106 = vpack.c.b16 %v1094, %v1093
          %v1107 = vpack.c.b16 %v1096, %v1095
          %v1108 = vpack.c.b16 %v1098, %v1097
          %v1109 = vpack.c.b16 %v1100, %v1099
          %v1110 = vpack.c.b16 %v1102, %v1101
          %1119 = vmatprep.subr.bf16.mxu0 0
          %1120 = vmatpush1.bf16.msra.mxu0 %v1103
          %1121 = vmatprep.subr.bf16.mxu0 0
          %1122 = vmatpush1.bf16.msra.mxu0 %v1104
          %1123 = vmatprep.subr.bf16.mxu0 0
          %1124 = vmatpush1.bf16.msra.mxu0 %v1105
          %1125 = vmatprep.subr.bf16.mxu0 0
          %1126 = vmatpush1.bf16.msra.mxu0 %v1106
          %1127 = vmatprep.subr.bf16.mxu0 0
          %1128 = vmatpush1.bf16.msra.mxu0 %v1107
          %1129 = vmatprep.subr.bf16.mxu0 0
          %1130 = vmatpush1.bf16.msra.mxu0 %v1108
          %1131 = vmatprep.subr.bf16.mxu0 0
          %1132 = vmatpush1.bf16.msra.mxu0 %v1109
          %1133 = vmatprep.subr.bf16.mxu0 0
          %1134 = vmatpush1.bf16.msra.mxu0 %v1110
          %1135 = vmatprep.subr.bf16.mxu0 0
          %1136 = vmatpush1.bf16.msra.mxu0 0
          %1137 = vmatprep.subr.bf16.mxu0 0
          %1138 = vmatpush1.bf16.msra.mxu0 0
          %1139 = vmatprep.subr.bf16.mxu0 0
          %1140 = vmatpush1.bf16.msra.mxu0 0
          %1141 = vmatprep.subr.bf16.mxu0 0
          %1142 = vmatpush1.bf16.msra.mxu0 0
          %1143 = vmatprep.subr.bf16.mxu0 0
          %1144 = vmatpush1.bf16.msra.mxu0 0
          %1145 = vmatprep.subr.bf16.mxu0 0
          %1146 = vmatpush1.bf16.msra.mxu0 0
          %1147 = vmatprep.subr.bf16.mxu0 0
          %1148 = vmatpush1.bf16.msra.mxu0 0
          %1149 = vmatprep.subr.bf16.mxu0 0
          %1150 = vmatpush1.bf16.msra.mxu0 0
          %1151 = vmatprep.mubr.bf16.mxu0 0
          %1152 = vmatmul.mubr.bf16.gmra.mrb[0].mxu0 %v1047
          %v1153 = vpop.f32.mrb[0].mxu0
          %v1154 = vadd.f32 %v1069, %v1153
          %v1155 = vpop.f32.mrb[0].mxu0
          %v1156 = vpop.f32.mrb[0].mxu0
          %v1157 = vpop.f32.mrb[0].mxu0
          %1158 = vdwg.mxu0
          %1159 = vst [vmem:[%s337] sm:$0xff] %v1154
        $region60: #{_lambda_.1} parent=51 // pred_fallthru
          _
        %s1160 = sand.u32 %s222, 1
        %s1161 = scalar_lea.sflag [#allocation4], %s1160
        %s1162 = sand.u32 %s222, 1
        %s1163 = smul.addr %s1162, 8
        %s1164 = scalar_lea.vmem [#allocation3], %s1163
        // Predicated region
        $region61: #{_lambda_.1} parent=51 // pred_check
          %p1165 = pneg %p232
        $region62: #{_lambda_.1} parent=51 // pred_check_branch
          %1167 = sbr.rel (%p1165) target = $region64
        $region63: #{_lambda_.1} parent=51 // pred_region
          %s1169 = ssub.s32 128, 128
          %1170 = vsyncadd %s1161, %s1169
          %s1171 = smul.addr %s26, 128
          %s1172 = scalar_lea.hbm %s8, %s1171
          %s1174 = sshll.u32 %s1164, 4
          %s1175 = int_to_ptr.vmem [resolvable:$true] %s1174
          %1177 = dma.vmem_to_hbm [thread:$0]  %s1175, 128, %s1172, %s1161
        $region64: #{_lambda_.1} parent=51 // pred_fallthru
          _
      $region52: #{_lambda_.1} parent=5 // pred_fallthru
        _
      %p1178 = scmp.le.s32.totalorder 2, %s17
      // Predicated region
      $region65: #{_lambda_.1} parent=5 // pred_check
        %p1179 = pneg %p1178
      $region66: #{_lambda_.1} parent=5 // pred_check_branch
        %1181 = sbr.rel (%p1179) target = $region68
      $region67: #{_lambda_.1} parent=5 // pred_region
        %s1182 = ssub.s32 %s17, 2
        // Predicated region
        $region69: #{_lambda_.1} parent=67 // pred_check
          %p1183 = pneg %p238
        $region70: #{_lambda_.1} parent=67 // pred_check_branch
          %1185 = sbr.rel (%p1183) target = $region72
        $region71: #{_lambda_.1} parent=67 // pred_region
          %s1186 = sand.u32 %s223, 1
          %s1187 = scalar_lea.sflag [#allocation4], %s1186
          %s1188 = sand.u32 %s223, 1
          %s1189 = smul.addr %s1188, 8
          %s1190 = scalar_lea.vmem [#allocation3], %s1189
          %1191 = dma.done %s1187, 128
        $region72: #{_lambda_.1} parent=67 // pred_fallthru
          _
      $region68: #{_lambda_.1} parent=5 // pred_fallthru
        _
    $region6: #{_lambda_.1} parent=1 // loop_footer
      %s21 = sadd.s32 1, %s17
    $region7: #{_lambda_.1} parent=1 // loop_footer_branch
      %16 = sbr.rel target = $region3
    $region8: #{_lambda_.1} parent=1 // loop_exit
      _
    %1192 = vsyncpa [#allocation4], 1
    %s1193 = scalar_lea.sflag [#allocation4], 1
    %1194 = vsyncpa %s1193, 1

</llo_original>
